<compile_context>
chip_gen: v7x
topology: tpu7x:2x2x1
jax: 0.10.0
libtpu: 0.0.40
codegen_flags: <defaults>
</compile_context>

<pallas_src>
import jax
import jax.numpy as jnp
from jax.experimental import pallas as pl
from jax.experimental.pallas import tpu as pltpu

FILTERS = (3, 4, 5)   # params.filters
LANE = 128            # TPU lane width: per-shift-group width & padded label width


def _make_kernel(filters, c, s):
    """Fused conv + bias + tanh + max-pool-over-time + linear kernel."""
    nj = max(filters)   # number of kernel-row shift groups

    def kernel(x_ref, wall_ref, wlin_ref, blin_ref, out_ref):
        tb = x_ref.shape[0]
        fa = x_ref.shape[2]
        tbs = tb * s

        # ---- single fused conv matmul (all filters / kernel rows at once) ----
        x2 = x_ref[...].reshape(tbs, fa)                                 # bf16
        y = jnp.dot(x2, wall_ref[...],
                    preferred_element_type=jnp.float32)                  # [tbs, nj*LANE] f32

        # ---- shift-add over kernel-row offset j:  z[r, g] = sum_j y[r+j, j*LANE+g]
        # (rows that wrap past a sentence end are masked out below)
        z = y[:, 0:LANE]
        for j in range(1, nj):
            blk = y[:, j * LANE:(j + 1) * LANE]                           # lane-aligned slice
            z = z + pltpu.roll(blk, tbs - j, 0)                           # rows shifted up by j

        act = jnp.tanh(z)                                                 # [tbs, LANE] f32

        # ---- per-filter valid-time mask, then max-pool over time ----
        t_idx = jax.lax.broadcasted_iota(jnp.int32, (tbs, LANE), 0) % s
        col = jax.lax.broadcasted_iota(jnp.int32, (tbs, LANE), 1)
        t_limit = jnp.zeros((tbs, LANE), jnp.int32)                       # pad cols: always masked
        for f, k in enumerate(filters):
            in_f = (col >= f * c) & (col < (f + 1) * c)
            t_limit = jnp.where(in_f, s - k + 1, t_limit)
        act = jnp.where(t_idx < t_limit, act, -2.0)                       # -2 < tanh(x) always
        pooled = jnp.max(act.reshape(tb, s, LANE), axis=1)                # [tb, LANE]

        # ---- final linear (lane-dense 128-wide output; padded w rows are zero) ----
        out = jnp.dot(pooled.astype(jnp.bfloat16), wlin_ref[...],
                      preferred_element_type=jnp.float32)
        out_ref[...] = out + blin_ref[...]

    return kernel


def cnn_forward(x, conv_ws, conv_bs, w_lin, b_lin, *, tb=8):
    """x: [B,S,F] f32; conv_ws[f]: [k_f,F,C]; conv_bs[f]: [1,C];
    w_lin: [len(FILTERS)*C, L]; b_lin: [1,L].  Returns [B,L] f32."""
    B, S, F = x.shape
    C = conv_ws[0].shape[-1]
    L = w_lin.shape[-1]
    nj = max(FILTERS)
    assert len(FILTERS) * C <= LANE, "fused channel block must fit in one 128-lane group"
    assert L <= LANE
    fa = F + 1                                    # +1 ones column folds the conv biases

    # Fused, lane-aligned conv weight (bf16): nj shift-groups of LANE columns each.
    w_all = jnp.zeros((fa, nj * LANE), jnp.float32)
    for f, (w, b) in enumerate(zip(conv_ws, conv_bs)):
        k = w.shape[0]
        for j in range(k):
            w_all = w_all.at[:F, j * LANE + f * C: j * LANE + (f + 1) * C].set(w[j])
        w_all = w_all.at[F, f * C:(f + 1) * C].set(b[0])        # bias -> j=0 group only
    w_all = w_all.astype(jnp.bfloat16)

    # Zero-padded (lane-dense) linear weight / bias.
    w_lin_pad = jnp.zeros((LANE, LANE), jnp.float32).at[:w_lin.shape[0], :L].set(w_lin)
    w_lin_pad = w_lin_pad.astype(jnp.bfloat16)
    b_lin_pad = jnp.zeros((1, LANE), jnp.float32).at[:, :L].set(b_lin)

    # Append ones column (bias), pad batch to a multiple of the batch tile, cast bf16.
    x_aug = jnp.concatenate([x, jnp.ones((B, S, 1), x.dtype)], axis=2)
    b_pad = ((B + tb - 1) // tb) * tb
    if b_pad != B:
        x_aug = jnp.pad(x_aug, ((0, b_pad - B), (0, 0), (0, 0)))
    x_aug = x_aug.astype(jnp.bfloat16)

    kernel = _make_kernel(FILTERS, C, S)
    out = pl.pallas_call(
        kernel,
        out_shape=jax.ShapeDtypeStruct((b_pad, LANE), jnp.float32),
        grid=(b_pad // tb,),
        in_specs=[
            pl.BlockSpec((tb, S, fa), lambda i: (i, 0, 0)),       # x: batch-tiled, pipelined
            pl.BlockSpec((fa, nj * LANE), lambda i: (0, 0)),      # fused conv weight: resident
            pl.BlockSpec((LANE, LANE), lambda i: (0, 0)),         # linear weight: resident
            pl.BlockSpec((1, LANE), lambda i: (0, 0)),            # linear bias: resident
        ],
        out_specs=pl.BlockSpec((tb, LANE), lambda i: (i, 0)),     # lane-dense output tiles
        compiler_params=pltpu.CompilerParams(
            dimension_semantics=("parallel",)),                   # shard batch tiles (v7x 2 TCs)
    )(x_aug, w_all, w_lin_pad, b_lin_pad)
    return out[:B, :L]


def ref_forward(x, conv_ws, conv_bs, w_lin, b_lin):
    """Plain-JAX f32 reference of the same forward pass (correctness check)."""
    feats = []
    for w, b in zip(conv_ws, conv_bs):
        k = w.shape[0]
        T = x.shape[1] - k + 1
        windows = jnp.stack([x[:, t:t + k, :] for t in range(T)], axis=1)  # [B,T,k,F]
        conv = jnp.einsum('btkf,kfc->btc', windows, w) + b[None]           # [B,T,C]
        feats.append(jnp.max(jnp.tanh(conv), axis=1))
    feats = jnp.concatenate(feats, axis=1)
    return feats @ w_lin + b_lin


if __name__ == "__main__":
    key = jax.random.PRNGKey(0)
    keys = jax.random.split(key, 12)

    # Small, self-consistent hyper-parameters (mirroring the module's __init__):
    B, S = 16, 8                       # batch, sequence length (batch tile = 8 -> grid of 2)
    word_emb_dim, pos_emb_dim = 32, 8
    vocab = 50
    pos_dis_limit = 10
    pos_vocab = pos_dis_limit * 2 + 3  # 23
    filter_num = 16
    labels_num = 5
    F = word_emb_dim + 2 * pos_emb_dim  # feature_dim = 48

    # Deterministic "parameters" (synthetic, no checkpoint loading).
    word_table = 0.1 * jax.random.normal(keys[0], (vocab, word_emb_dim), jnp.float32)
    pos1_table = 0.1 * jax.random.normal(keys[1], (pos_vocab, pos_emb_dim), jnp.float32)
    pos2_table = 0.1 * jax.random.normal(keys[2], (pos_vocab, pos_emb_dim), jnp.float32)

    conv_ws, conv_bs = [], []
    for idx, k in enumerate(FILTERS):
        conv_ws.append(0.1 * jax.random.normal(keys[3 + idx], (k, F, filter_num), jnp.float32))
        conv_bs.append(jnp.full((1, filter_num), 0.01 * (idx + 1), jnp.float32))
    w_lin = 0.1 * jax.random.normal(keys[6], (filter_num * len(FILTERS), labels_num), jnp.float32)
    b_lin = jnp.full((1, labels_num), 0.02, jnp.float32)

    # Inputs (token / position-distance indices).
    sents = jax.random.randint(keys[7], (B, S), 0, vocab)
    pos1s = jax.random.randint(keys[8], (B, S), 0, pos_vocab)
    pos2s = jax.random.randint(keys[9], (B, S), 0, pos_vocab)

    # Glue: embedding lookups + concat (dim=2), matching the PyTorch forward.
    word_emb = jnp.take(word_table, sents, axis=0)    # [B, S, word_emb_dim]
    pos1_emb = jnp.take(pos1_table, pos1s, axis=0)    # [B, S, pos_emb_dim]
    pos2_emb = jnp.take(pos2_table, pos2s, axis=0)    # [B, S, pos_emb_dim]
    x = jnp.concatenate([word_emb, pos1_emb, pos2_emb], axis=2)  # [B, S, F]

    out = cnn_forward(x, conv_ws, conv_bs, w_lin, b_lin, tb=8)
    out = jax.block_until_ready(out)

    ref = ref_forward(x, conv_ws, conv_bs, w_lin, b_lin)
    assert out.shape == (B, labels_num)
    # bf16 matmul inputs (f32 accumulation) -> loosened tolerance vs the f32 reference.
    assert jnp.allclose(out, ref, atol=2e-2, rtol=2e-2), "Pallas output mismatch vs JAX reference"

    print("KERNEL_OK")
</pallas_src>

<mosaic_0001>
module attributes {stable_mosaic.version = 11 : i64} {
  func.func @kernel(%arg0: i32, %arg1: memref<8x8x49xbf16, #tpu.memory_space<vmem>>, %arg2: memref<49x640xbf16, #tpu.memory_space<vmem>>, %arg3: memref<128x128xbf16, #tpu.memory_space<vmem>>, %arg4: memref<1x128xf32, #tpu.memory_space<vmem>>, %arg5: memref<8x128xf32, #tpu.memory_space<vmem>>) attributes {dimension_semantics = [#tpu.dimension_semantics<parallel>], iteration_bounds = array<i64: 2>, scalar_prefetch = 0 : i64, scratch_operands = 0 : i64, tpu.core_type = #tpu.core_type<tc>, window_params = [{transform_indices = @transform_0, window_bounds = array<i64: 8, 8, 49>}, {pipeline_mode = #tpu.pipeline_mode<synchronous>, transform_indices = @transform_1, window_bounds = array<i64: 49, 640>}, {pipeline_mode = #tpu.pipeline_mode<synchronous>, transform_indices = @transform_2, window_bounds = array<i64: 128, 128>}, {pipeline_mode = #tpu.pipeline_mode<synchronous>, transform_indices = @transform_3, window_bounds = array<i64: 1, 128>}, {transform_indices = @transform_4, window_bounds = array<i64: 8, 128>}]} {
    %c0 = arith.constant 0 : index
    %c0_0 = arith.constant 0 : index
    %c0_1 = arith.constant 0 : index
    %0 = vector.load %arg1[%c0, %c0_0, %c0_1] : memref<8x8x49xbf16, #tpu.memory_space<vmem>>, vector<8x8x49xbf16>
    %1 = vector.shape_cast %0 : vector<8x8x49xbf16> to vector<64x49xbf16>
    %c0_2 = arith.constant 0 : index
    %c0_3 = arith.constant 0 : index
    %2 = vector.load %arg2[%c0_2, %c0_3] : memref<49x640xbf16, #tpu.memory_space<vmem>>, vector<49x640xbf16>
    %cst = arith.constant dense<0.000000e+00> : vector<64x640xf32>
    %3 = tpu.matmul %1, %2, %cst {dimension_numbers = #tpu.dot_dimension_numbers<[1], [0], [0], [1], [0, 0, 1, 1], [], []>} : vector<64x49xbf16>, vector<49x640xbf16>, vector<64x640xf32> -> vector<64x640xf32>
    %4 = vector.extract_strided_slice %3 {offsets = [0, 0], sizes = [64, 128], strides = [1, 1]} : vector<64x640xf32> to vector<64x128xf32>
    %5 = vector.extract_strided_slice %3 {offsets = [0, 128], sizes = [64, 128], strides = [1, 1]} : vector<64x640xf32> to vector<64x128xf32>
    %c63_i32 = arith.constant 63 : i32
    %6 = tpu.dynamic_rotate %5 by %c63_i32 dim 0 : vector<64x128xf32>, i32 -> vector<64x128xf32>
    %7 = arith.addf %4, %6 : vector<64x128xf32>
    %8 = vector.extract_strided_slice %3 {offsets = [0, 256], sizes = [64, 128], strides = [1, 1]} : vector<64x640xf32> to vector<64x128xf32>
    %c62_i32 = arith.constant 62 : i32
    %9 = tpu.dynamic_rotate %8 by %c62_i32 dim 0 : vector<64x128xf32>, i32 -> vector<64x128xf32>
    %10 = arith.addf %7, %9 : vector<64x128xf32>
    %11 = vector.extract_strided_slice %3 {offsets = [0, 384], sizes = [64, 128], strides = [1, 1]} : vector<64x640xf32> to vector<64x128xf32>
    %c61_i32 = arith.constant 61 : i32
    %12 = tpu.dynamic_rotate %11 by %c61_i32 dim 0 : vector<64x128xf32>, i32 -> vector<64x128xf32>
    %13 = arith.addf %10, %12 : vector<64x128xf32>
    %14 = vector.extract_strided_slice %3 {offsets = [0, 512], sizes = [64, 128], strides = [1, 1]} : vector<64x640xf32> to vector<64x128xf32>
    %c60_i32 = arith.constant 60 : i32
    %15 = tpu.dynamic_rotate %14 by %c60_i32 dim 0 : vector<64x128xf32>, i32 -> vector<64x128xf32>
    %16 = arith.addf %13, %15 : vector<64x128xf32>
    %17 = math.tanh %16 : vector<64x128xf32>
    %18 = tpu.iota {dimensions = array<i32: 0>} : vector<64x128xi32>
    %c8_i32 = arith.constant 8 : i32
    %c0_i32 = arith.constant 0 : i32
    %19 = arith.cmpi eq, %c8_i32, %c0_i32 : i32
    %c1_i32 = arith.constant 1 : i32
    %20 = arith.select %19, %c1_i32, %c8_i32 : i32
    %21 = vector.broadcast %20 : i32 to vector<64x128xi32>
    %22 = arith.remsi %18, %21 : vector<64x128xi32>
    %c0_i32_4 = arith.constant 0 : i32
    %23 = vector.broadcast %c0_i32_4 : i32 to vector<64x128xi32>
    %24 = arith.cmpi ne, %22, %23 : vector<64x128xi32>
    %c0_i32_5 = arith.constant 0 : i32
    %25 = vector.broadcast %c0_i32_5 : i32 to vector<64x128xi32>
    %26 = arith.cmpi slt, %22, %25 : vector<64x128xi32>
    %c0_i32_6 = arith.constant 0 : i32
    %27 = arith.cmpi slt, %20, %c0_i32_6 : i32
    %28 = vector.broadcast %27 : i1 to vector<64x128xi1>
    %29 = vector.broadcast %28 : vector<64x128xi1> to vector<64x128xi1>
    %30 = arith.xori %26, %29 : vector<64x128xi1>
    %31 = arith.andi %30, %24 : vector<64x128xi1>
    %32 = vector.broadcast %20 : i32 to vector<64x128xi32>
    %33 = arith.addi %22, %32 : vector<64x128xi32>
    %34 = arith.select %31, %33, %22 : vector<64x128xi1>, vector<64x128xi32>
    %35 = tpu.iota {dimensions = array<i32: 1>} : vector<64x128xi32>
    %c0_i32_7 = arith.constant 0 : i32
    %36 = vector.broadcast %c0_i32_7 : i32 to vector<64x128xi32>
    %c0_i32_8 = arith.constant 0 : i32
    %37 = vector.broadcast %c0_i32_8 : i32 to vector<64x128xi32>
    %38 = arith.cmpi sge, %35, %37 : vector<64x128xi32>
    %c16_i32 = arith.constant 16 : i32
    %39 = vector.broadcast %c16_i32 : i32 to vector<64x128xi32>
    %40 = arith.cmpi slt, %35, %39 : vector<64x128xi32>
    %41 = arith.andi %38, %40 : vector<64x128xi1>
    %c6_i32 = arith.constant 6 : i32
    %42 = vector.broadcast %c6_i32 : i32 to vector<64x128xi32>
    %43 = arith.select %41, %42, %36 : vector<64x128xi1>, vector<64x128xi32>
    %c16_i32_9 = arith.constant 16 : i32
    %44 = vector.broadcast %c16_i32_9 : i32 to vector<64x128xi32>
    %45 = arith.cmpi sge, %35, %44 : vector<64x128xi32>
    %c32_i32 = arith.constant 32 : i32
    %46 = vector.broadcast %c32_i32 : i32 to vector<64x128xi32>
    %47 = arith.cmpi slt, %35, %46 : vector<64x128xi32>
    %48 = arith.andi %45, %47 : vector<64x128xi1>
    %c5_i32 = arith.constant 5 : i32
    %49 = vector.broadcast %c5_i32 : i32 to vector<64x128xi32>
    %50 = arith.select %48, %49, %43 : vector<64x128xi1>, vector<64x128xi32>
    %c32_i32_10 = arith.constant 32 : i32
    %51 = vector.broadcast %c32_i32_10 : i32 to vector<64x128xi32>
    %52 = arith.cmpi sge, %35, %51 : vector<64x128xi32>
    %c48_i32 = arith.constant 48 : i32
    %53 = vector.broadcast %c48_i32 : i32 to vector<64x128xi32>
    %54 = arith.cmpi slt, %35, %53 : vector<64x128xi32>
    %55 = arith.andi %52, %54 : vector<64x128xi1>
    %c4_i32 = arith.constant 4 : i32
    %56 = vector.broadcast %c4_i32 : i32 to vector<64x128xi32>
    %57 = arith.select %55, %56, %50 : vector<64x128xi1>, vector<64x128xi32>
    %58 = arith.cmpi slt, %34, %57 : vector<64x128xi32>
    %cst_11 = arith.constant -2.000000e+00 : f32
    %59 = vector.broadcast %cst_11 : f32 to vector<64x128xf32>
    %60 = arith.select %58, %17, %59 : vector<64x128xi1>, vector<64x128xf32>
    %61 = vector.shape_cast %60 : vector<64x128xf32> to vector<8x8x128xf32>
    %cst_12 = arith.constant dense<0xFF800000> : vector<8x128xf32>
    %62 = vector.multi_reduction <maximumf>, %61, %cst_12 [1] : vector<8x8x128xf32> to vector<8x128xf32>
    %63 = arith.truncf %62 : vector<8x128xf32> to vector<8x128xbf16>
    %c0_13 = arith.constant 0 : index
    %c0_14 = arith.constant 0 : index
    %64 = vector.load %arg3[%c0_13, %c0_14] : memref<128x128xbf16, #tpu.memory_space<vmem>>, vector<128x128xbf16>
    %cst_15 = arith.constant dense<0.000000e+00> : vector<8x128xf32>
    %65 = tpu.matmul %63, %64, %cst_15 {dimension_numbers = #tpu.dot_dimension_numbers<[1], [0], [0], [1], [0, 0, 1, 1], [], []>} : vector<8x128xbf16>, vector<128x128xbf16>, vector<8x128xf32> -> vector<8x128xf32>
    %c0_16 = arith.constant 0 : index
    %c0_17 = arith.constant 0 : index
    %66 = vector.load %arg4[%c0_16, %c0_17] : memref<1x128xf32, #tpu.memory_space<vmem>>, vector<1x128xf32>
    %67 = vector.broadcast %66 : vector<1x128xf32> to vector<8x128xf32>
    %68 = arith.addf %65, %67 : vector<8x128xf32>
    %c0_18 = arith.constant 0 : index
    %c0_19 = arith.constant 0 : index
    %69 = vector.load %arg5[%c0_18, %c0_19] : memref<8x128xf32, #tpu.memory_space<vmem>>, vector<8x128xf32>
    tpu.vector_store %arg5[%c0_18, %c0_19], %68 {strides = array<i32>} : memref<8x128xf32, #tpu.memory_space<vmem>>, vector<8x128xf32>,
    return
  }
  func.func @transform_0(%arg0: i32) -> (i32, i32, i32) {
    %c0_i32 = arith.constant 0 : i32
    %c0_i32_0 = arith.constant 0 : i32
    %c0_i32_1 = arith.constant 0 : i32
    return %arg0, %c0_i32, %c0_i32_0 : i32, i32, i32
  }
  func.func @transform_1(%arg0: i32) -> (i32, i32) {
    %c0_i32 = arith.constant 0 : i32
    %c0_i32_0 = arith.constant 0 : i32
    %c0_i32_1 = arith.constant 0 : i32
    return %c0_i32, %c0_i32_0 : i32, i32
  }
  func.func @transform_2(%arg0: i32) -> (i32, i32) {
    %c0_i32 = arith.constant 0 : i32
    %c0_i32_0 = arith.constant 0 : i32
    %c0_i32_1 = arith.constant 0 : i32
    return %c0_i32, %c0_i32_0 : i32, i32
  }
  func.func @transform_3(%arg0: i32) -> (i32, i32) {
    %c0_i32 = arith.constant 0 : i32
    %c0_i32_0 = arith.constant 0 : i32
    %c0_i32_1 = arith.constant 0 : i32
    return %c0_i32, %c0_i32_0 : i32, i32
  }
  func.func @transform_4(%arg0: i32) -> (i32, i32) {
    %c0_i32 = arith.constant 0 : i32
    %c0_i32_0 = arith.constant 0 : i32
    return %arg0, %c0_i32 : i32, i32
  }
}

</mosaic_0001>

<llo_original>
// kernel: tpu_custom_call.1
$region0: #{tpu_custom_call.1}
  #allocation0 [shape = 'u32[]', space=smem, size = 0x4, offset = 0x4, fixed_abs, tag = 'smem constant byte address 0x4 - core index']
  #allocation1 [shape = 'u32[144,128]{1,0:T(1,128)}', space=vmem, size = 0x12000, scoped, tag = 'internal scratch']
  %s0 = inlined_call_operand.hbm [shape: bf16[16,8,49], index: 0, kind: input, shape index: {}]
  %s1 = inlined_call_operand.hbm [shape: bf16[49,640], index: 1, kind: input, shape index: {}]
  %s2 = inlined_call_operand.hbm [shape: bf16[128,128], index: 2, kind: input, shape index: {}]
  %s3 = inlined_call_operand.vmem [shape: f32[1,128], index: 3, kind: input, shape index: {}]
  %s4 = inlined_call_operand.hbm [shape: f32[16,128], index: 4, kind: output, shape index: {}]
  %s5 = sld [smem:[#allocation0]]
  $region61: #{tpu_custom_call.1} parent=0
    _
  %s7 = ssub.s32 1, %s5
  %s8 = scalar_select 0, %s7, %s5
  $region1: #{tpu_custom_call.1} parent=0
    #allocation2 [shape = 'u8[32768]{0}', space=vmem, size = 0x8000, scoped, tag = 'input window, operand 0']
    #allocation3 [shape = 's32[2]{0}', space=sflag, size = 0x8, scoped, tag = 'scoped memory for tpu_custom_call.1']
    #allocation4 [shape = 's32[2]{0}', space=sflag, size = 0x8, scoped, tag = 'scoped memory for tpu_custom_call.1']
    #allocation5 [shape = 'u8[71680]{0}', space=vmem, size = 0x11800, scoped, tag = 'input window, operand 1, single buffered']
    #allocation6 [shape = 's32[1]{0}', space=sflag, size = 0x4, scoped, tag = 'scoped memory for tpu_custom_call.1']
    #allocation7 [shape = 'u8[32768]{0}', space=vmem, size = 0x8000, scoped, tag = 'input window, operand 2, single buffered']
    #allocation8 [shape = 'u8[8192]{0}', space=vmem, size = 0x2000, scoped, tag = 'output window, operand 0']
    %9 = vsyncpa [#allocation3], 0
    %s10 = scalar_lea.sflag [#allocation3], 1
    %11 = vsyncpa %s10, 0
    %12 = vsyncpa [#allocation6], 0
    %13 = vsyncpa [#allocation4], 0
    %s14 = scalar_lea.sflag [#allocation4], 1
    %15 = vsyncpa %s14, 0
    loop: start=0, step=1, limit=4
    $region2: #{tpu_custom_call.1} parent=1 // loop_pre_header
      _
    $region3: #{tpu_custom_call.1} parent=1 // loop_header
      %s17 = sphi 0, %s21
      %p18 = scmp.ge.s32.totalorder %s17, 4
      %s27 = sphi 0, %s29
      %s30 = sphi 0, %s27
      %s31 = sphi 0, %s30
      %s47 = sphi 0, %s31
      %s51 = sphi 0, %s51
      %s53 = sphi 0, %s51
      %s54 = sphi 0, %s53
      %s68 = sphi 0, %s54
      %s72 = sphi 0, %s72
      %s74 = sphi 0, %s72
      %s75 = sphi 0, %s74
      %s89 = sphi 0, %s75
      %s93 = sphi 0, %s93
      %s95 = sphi 0, %s93
      %s96 = sphi 0, %s95
      %s110 = sphi 0, %s96
      %s116 = sphi 0, %s118
      %s119 = sphi 0, %s116
      %s120 = sphi 0, %s119
      %s136 = sphi 0, %s120
    $region4: #{tpu_custom_call.1} parent=1 // loop_header_branch
      %20 = sbr.rel (%p18) target = $region8
    $region5: #{tpu_custom_call.1} parent=1 // loop_body
      %s22 = ssub.s32 %s17, 1
      %s23 = ssub.s32 %s17, 2
      %s24 = sadd.s32 %s17, 1
      %s25 = ssub.s32 %s17, %s24
      %p26 = scmp.eq.s32.totalorder %s25, 0
      %s28 = sadd.s32 %s27, 1
      %s29 = scalar_select %p26, %s27, %s28
      %p32 = pneg %p26
      %p33 = scmp.eq.s32.totalorder %s17, 1
      %p34 = por %p32, %p33
      %p35 = scmp.ne.s32.totalorder %s27, %s30
      %p36 = scmp.eq.s32.totalorder %s17, 0
      %p37 = por %p35, %p36
      %p38 = scmp.ne.s32.totalorder %s27, %s30
      %p39 = scmp.eq.s32.totalorder %s22, 1
      %p40 = por %p38, %p39
      %p41 = scmp.ne.s32.totalorder %s30, %s31
      %p42 = scmp.eq.s32.totalorder %s22, 0
      %p43 = por %p41, %p42
      %p44 = scmp.ne.s32.totalorder %s30, %s31
      %p45 = scmp.eq.s32.totalorder %s23, 1
      %p46 = por %p44, %p45
      %p48 = scmp.ne.s32.totalorder %s31, %s47
      %p49 = scmp.eq.s32.totalorder %s23, 0
      %p50 = por %p48, %p49
      %s52 = sadd.s32 %s51, 1
      %p55 = scmp.eq.s32.totalorder %s17, 1
      %p56 = scmp.ne.s32.totalorder %s51, %s53
      %p57 = scmp.eq.s32.totalorder %s17, 0
      %p58 = por %p56, %p57
      %p59 = scmp.ne.s32.totalorder %s51, %s53
      %p60 = scmp.eq.s32.totalorder %s22, 1
      %p61 = por %p59, %p60
      %p62 = scmp.ne.s32.totalorder %s53, %s54
      %p63 = scmp.eq.s32.totalorder %s22, 0
      %p64 = por %p62, %p63
      %p65 = scmp.ne.s32.totalorder %s53, %s54
      %p66 = scmp.eq.s32.totalorder %s23, 1
      %p67 = por %p65, %p66
      %p69 = scmp.ne.s32.totalorder %s54, %s68
      %p70 = scmp.eq.s32.totalorder %s23, 0
      %p71 = por %p69, %p70
      %s73 = sadd.s32 %s72, 1
      %p76 = scmp.eq.s32.totalorder %s17, 1
      %p77 = scmp.ne.s32.totalorder %s72, %s74
      %p78 = scmp.eq.s32.totalorder %s17, 0
      %p79 = por %p77, %p78
      %p80 = scmp.ne.s32.totalorder %s72, %s74
      %p81 = scmp.eq.s32.totalorder %s22, 1
      %p82 = por %p80, %p81
      %p83 = scmp.ne.s32.totalorder %s74, %s75
      %p84 = scmp.eq.s32.totalorder %s22, 0
      %p85 = por %p83, %p84
      %p86 = scmp.ne.s32.totalorder %s74, %s75
      %p87 = scmp.eq.s32.totalorder %s23, 1
      %p88 = por %p86, %p87
      %p90 = scmp.ne.s32.totalorder %s75, %s89
      %p91 = scmp.eq.s32.totalorder %s23, 0
      %p92 = por %p90, %p91
      %s94 = sadd.s32 %s93, 1
      %p97 = scmp.eq.s32.totalorder %s17, 1
      %p98 = scmp.ne.s32.totalorder %s93, %s95
      %p99 = scmp.eq.s32.totalorder %s17, 0
      %p100 = por %p98, %p99
      %p101 = scmp.ne.s32.totalorder %s93, %s95
      %p102 = scmp.eq.s32.totalorder %s22, 1
      %p103 = por %p101, %p102
      %p104 = scmp.ne.s32.totalorder %s95, %s96
      %p105 = scmp.eq.s32.totalorder %s22, 0
      %p106 = por %p104, %p105
      %p107 = scmp.ne.s32.totalorder %s95, %s96
      %p108 = scmp.eq.s32.totalorder %s23, 1
      %p109 = por %p107, %p108
      %p111 = scmp.ne.s32.totalorder %s96, %s110
      %p112 = scmp.eq.s32.totalorder %s23, 0
      %p113 = por %p111, %p112
      %s114 = ssub.s32 %s17, %s24
      %p115 = scmp.eq.s32.totalorder %s114, 0
      %s117 = sadd.s32 %s116, 1
      %s118 = scalar_select %p115, %s116, %s117
      %p121 = pneg %p115
      %p122 = scmp.eq.s32.totalorder %s17, 1
      %p123 = por %p121, %p122
      %p124 = scmp.ne.s32.totalorder %s116, %s119
      %p125 = scmp.eq.s32.totalorder %s17, 0
      %p126 = por %p124, %p125
      %p127 = scmp.ne.s32.totalorder %s116, %s119
      %p128 = scmp.eq.s32.totalorder %s22, 1
      %p129 = por %p127, %p128
      %p130 = scmp.ne.s32.totalorder %s119, %s120
      %p131 = scmp.eq.s32.totalorder %s22, 0
      %p132 = por %p130, %p131
      %p133 = scmp.ne.s32.totalorder %s119, %s120
      %p134 = scmp.eq.s32.totalorder %s23, 1
      %p135 = por %p133, %p134
      %p137 = scmp.ne.s32.totalorder %s120, %s136
      %p138 = scmp.eq.s32.totalorder %s23, 0
      %p139 = por %p137, %p138
      %p140 = scmp.le.s32.totalorder 1, %s17
      %p141 = scmp.lt.s32.totalorder %s17, 3
      %p142 = pnand %p140, %p141
      %p143 = pneg %p142
      // Predicated region
      $region9: #{tpu_custom_call.1} parent=5 // pred_check
        _
      $region10: #{tpu_custom_call.1} parent=5 // pred_check_branch
        %145 = sbr.rel (%p142) target = $region12
      $region11: #{tpu_custom_call.1} parent=5 // pred_region
        %s146 = ssub.s32 %s17, 1
        // Predicated region
        $region13: #{tpu_custom_call.1} parent=11 // pred_check
          %p147 = pneg %p64
        $region14: #{tpu_custom_call.1} parent=11 // pred_check_branch
          %149 = sbr.rel (%p147) target = $region16
        $region15: #{tpu_custom_call.1} parent=11 // pred_region
          %s151 = ssub.s32 2240, 2240
          %152 = vsyncadd [#allocation6], %s151
          %s153 = sshll.u32 [#allocation5], 4
          %s154 = int_to_ptr.vmem [resolvable:$true] %s153
          %159 = dma.hbm_to_vmem [thread:$0]  %s1, 2240, %s154, [#allocation6], 320, 320, 20
        $region16: #{tpu_custom_call.1} parent=11 // pred_fallthru
          _
        // Predicated region
        $region17: #{tpu_custom_call.1} parent=11 // pred_check
          %p160 = pneg %p85
        $region18: #{tpu_custom_call.1} parent=11 // pred_check_branch
          %162 = sbr.rel (%p160) target = $region20
        $region19: #{tpu_custom_call.1} parent=11 // pred_region
          %s164 = ssub.s32 1024, 1024
          %165 = vsyncadd [#allocation6], %s164
          %s166 = sshll.u32 [#allocation7], 4
          %s167 = int_to_ptr.vmem [resolvable:$true] %s166
          %172 = dma.hbm_to_vmem [thread:$0]  %s2, 1024, %s167, [#allocation6], 64, 64, 4
        $region20: #{tpu_custom_call.1} parent=11 // pred_fallthru
          _
        // Predicated region
        $region21: #{tpu_custom_call.1} parent=11 // pred_check
          %p173 = pneg %p106
        $region22: #{tpu_custom_call.1} parent=11 // pred_check_branch
          %175 = sbr.rel (%p173) target = $region24
        $region23: #{tpu_custom_call.1} parent=11 // pred_region
          _
        $region24: #{tpu_custom_call.1} parent=11 // pred_fallthru
          _
      $region12: #{tpu_custom_call.1} parent=5 // pred_fallthru
        _
      %p176 = scmp.lt.s32.totalorder %s17, 2
      // Predicated region
      $region25: #{tpu_custom_call.1} parent=5 // pred_check
        %p177 = pneg %p176
      $region26: #{tpu_custom_call.1} parent=5 // pred_check_branch
        %179 = sbr.rel (%p177) target = $region28
      $region27: #{tpu_custom_call.1} parent=5 // pred_region
        // Predicated region
        $region29: #{tpu_custom_call.1} parent=27 // pred_check
          %p180 = pneg %p37
        $region30: #{tpu_custom_call.1} parent=27 // pred_check_branch
          %182 = sbr.rel (%p180) target = $region32
        $region31: #{tpu_custom_call.1} parent=27 // pred_region
          %s183 = sand.u32 %s27, 1
          %s184 = scalar_lea.sflag [#allocation3], %s183
          %s185 = sand.u32 %s27, 1
          %s186 = smul.addr %s185, 32
          %s187 = scalar_lea.vmem [#allocation2], %s186
          %s188 = smul.u32 8, %s17
          %s190 = ssub.s32 512, 512
          %191 = vsyncadd %s184, %s190
          %s192 = smul.addr %s188, 64
          %s193 = scalar_lea.hbm %s0, %s192
          %s194 = sshll.u32 %s187, 4
          %s195 = int_to_ptr.vmem [resolvable:$true] %s194
          %200 = dma.hbm_to_vmem [thread:$0]  %s193, 512, %s195, %s184, 64, 64, 4
        $region32: #{tpu_custom_call.1} parent=27 // pred_fallthru
          _
      $region28: #{tpu_custom_call.1} parent=5 // pred_fallthru
        _
      %p201 = scmp.le.s32.totalorder 1, %s17
      %p202 = scmp.lt.s32.totalorder %s17, 3
      %p203 = pnand %p201, %p202
      %p204 = pneg %p203
      // Predicated region
      $region33: #{tpu_custom_call.1} parent=5 // pred_check
        _
      $region34: #{tpu_custom_call.1} parent=5 // pred_check_branch
        %206 = sbr.rel (%p203) target = $region36
      $region35: #{tpu_custom_call.1} parent=5 // pred_region
        %s207 = ssub.s32 %s17, 1
        %s208 = sand.u32 %s30, 1
        %s209 = scalar_lea.sflag [#allocation3], %s208
        %s210 = sand.u32 %s30, 1
        %s211 = smul.addr %s210, 32
        %s212 = scalar_lea.vmem [#allocation2], %s211
        // Predicated region
        $region37: #{tpu_custom_call.1} parent=35 // pred_check
          %p213 = pneg %p43
        $region38: #{tpu_custom_call.1} parent=35 // pred_check_branch
          %215 = sbr.rel (%p213) target = $region40
        $region39: #{tpu_custom_call.1} parent=35 // pred_region
          %216 = dma.done %s209, 512
        $region40: #{tpu_custom_call.1} parent=35 // pred_fallthru
          _
        // Predicated region
        $region41: #{tpu_custom_call.1} parent=35 // pred_check
          %p217 = pneg %p64
        $region42: #{tpu_custom_call.1} parent=35 // pred_check_branch
          %219 = sbr.rel (%p217) target = $region44
        $region43: #{tpu_custom_call.1} parent=35 // pred_region
          %220 = dma.done [#allocation6], 2240
        $region44: #{tpu_custom_call.1} parent=35 // pred_fallthru
          _
        // Predicated region
        $region45: #{tpu_custom_call.1} parent=35 // pred_check
          %p221 = pneg %p85
        $region46: #{tpu_custom_call.1} parent=35 // pred_check_branch
          %223 = sbr.rel (%p221) target = $region48
        $region47: #{tpu_custom_call.1} parent=35 // pred_region
          %224 = dma.done [#allocation6], 1024
        $region48: #{tpu_custom_call.1} parent=35 // pred_fallthru
          _
        %s225 = sand.u32 %s30, 1
        %s226 = scalar_lea.sflag [#allocation3], %s225
        %s227 = sand.u32 %s30, 1
        %s228 = smul.addr %s227, 32
        %s229 = scalar_lea.vmem [#allocation2], %s228
        %p230 = pneg %p43
        %p231 = pneg %p40
        %p232 = pneg %p64
        %p233 = pneg %p61
        %p234 = pneg %p85
        %p235 = pneg %p82
        %p236 = pneg %p106
        %p237 = pneg %p103
        %p238 = pneg %p132
        %p239 = pneg %p129
        %s240 = sand.u32 %s119, 1
        %s241 = scalar_lea.sflag [#allocation4], %s240
        %s242 = sand.u32 %s119, 1
        %s243 = smul.addr %s242, 8
        %s244 = scalar_lea.vmem [#allocation8], %s243
        %s245 = smul.u32 8, %s22
        %v247 = vld [vmem:[%s212] sm:$0xf]
        %v248 = vld [vmem:[%s212 + $0x4] sm:$0xf]
        %v249 = vld [vmem:[%s212 + $0x8] sm:$0xf]
        %v250 = vld [vmem:[%s212 + $0xc] sm:$0xf]
        %v251 = vld [vmem:[%s212 + $0x10] sm:$0xf]
        %v252 = vld [vmem:[%s212 + $0x14] sm:$0xf]
        %v253 = vld [vmem:[%s212 + $0x18] sm:$0xf]
        %v254 = vld [vmem:[%s212 + $0x1c] sm:$0xf]
        %v255 = vld [vmem:[#allocation5] sm:$0xff]
        %v256 = vld [vmem:[#allocation5 + $0x8] sm:$0xff]
        %v257 = vld [vmem:[#allocation5 + $0x10] sm:$0xf]
        %v258 = vld [vmem:[#allocation5 + $0x14] sm:$0xff]
        %v259 = vld [vmem:[#allocation5 + $0x1c] sm:$0xff]
        %v260 = vld [vmem:[#allocation5 + $0x24] sm:$0xf]
        %v261 = vld [vmem:[#allocation5 + $0x28] sm:$0xff]
        %v262 = vld [vmem:[#allocation5 + $0x30] sm:$0xff]
        %v263 = vld [vmem:[#allocation5 + $0x38] sm:$0xf]
        %v264 = vld [vmem:[#allocation5 + $0x3c] sm:$0xff]
        %v265 = vld [vmem:[#allocation5 + $0x44] sm:$0xff]
        %v266 = vld [vmem:[#allocation5 + $0x4c] sm:$0xf]
        %v267 = vld [vmem:[#allocation5 + $0x50] sm:$0xff]
        %v268 = vld [vmem:[#allocation5 + $0x58] sm:$0xff]
        %v269 = vld [vmem:[#allocation5 + $0x60] sm:$0xf]
        %v270 = vld [vmem:[#allocation5 + $0x64] sm:$0xff]
        %v271 = vld [vmem:[#allocation5 + $0x6c] sm:$0xff]
        %v272 = vld [vmem:[#allocation5 + $0x74] sm:$0xf]
        %v273 = vld [vmem:[#allocation5 + $0x78] sm:$0x11]
        %v274 = vld [vmem:[#allocation5 + $0x80] sm:$0x11]
        %v275 = vld [vmem:[#allocation5 + $0x88] sm:$0x1]
        %v284 = vunpack.c.l.b16 %v247
        %v285 = vunpack.c.l.b16 %v248
        %v286 = vunpack.c.l.b16 %v249
        %v287 = vunpack.c.l.b16 %v250
        %v288 = vunpack.c.l.b16 %v251
        %v289 = vunpack.c.l.b16 %v252
        %v290 = vunpack.c.l.b16 %v253
        %v291 = vunpack.c.l.b16 %v254
        %v292 = vpack.c.b16 %v285, %v284
        %v293 = vpack.c.b16 %v287, %v286
        %v294 = vpack.c.b16 %v289, %v288
        %v295 = vpack.c.b16 %v291, %v290
        %v317 = vunpack.c.l.b16 %v255
        %v318 = vunpack.c.h.b16 %v255
        %v319 = vunpack.c.l.b16 %v256
        %v320 = vunpack.c.h.b16 %v256
        %v321 = vunpack.c.l.b16 %v257
        %v322 = vunpack.c.l.b16 %v258
        %v323 = vunpack.c.h.b16 %v258
        %v324 = vunpack.c.l.b16 %v259
        %v325 = vunpack.c.h.b16 %v259
        %v326 = vunpack.c.l.b16 %v260
        %v327 = vunpack.c.l.b16 %v261
        %v328 = vunpack.c.h.b16 %v261
        %v329 = vunpack.c.l.b16 %v262
        %v330 = vunpack.c.h.b16 %v262
        %v331 = vunpack.c.l.b16 %v263
        %v332 = vunpack.c.l.b16 %v264
        %v333 = vunpack.c.h.b16 %v264
        %v334 = vunpack.c.l.b16 %v265
        %v335 = vunpack.c.h.b16 %v265
        %v336 = vunpack.c.l.b16 %v266
        %v337 = vunpack.c.l.b16 %v267
        %v338 = vunpack.c.h.b16 %v267
        %v339 = vunpack.c.l.b16 %v268
        %v340 = vunpack.c.h.b16 %v268
        %v341 = vunpack.c.l.b16 %v269
        %v342 = vunpack.c.l.b16 %v270
        %v343 = vunpack.c.h.b16 %v270
        %v344 = vunpack.c.l.b16 %v271
        %v345 = vunpack.c.h.b16 %v271
        %v346 = vunpack.c.l.b16 %v272
        %v347 = vunpack.c.l.b16 %v273
        %v348 = vunpack.c.h.b16 %v273
        %v349 = vunpack.c.l.b16 %v274
        %v350 = vunpack.c.h.b16 %v274
        %v351 = vunpack.c.l.b16 %v275
        %v352 = vpack.c.b16 %v322, %v317
        %v353 = vpack.c.b16 %v323, %v318
        %v354 = vpack.c.b16 %v324, %v319
        %v355 = vpack.c.b16 %v325, %v320
        %v356 = vpack.c.b16 %v326, %v321
        %v357 = vpack.c.b16 %v332, %v327
        %v358 = vpack.c.b16 %v333, %v328
        %v359 = vpack.c.b16 %v334, %v329
        %v360 = vpack.c.b16 %v335, %v330
        %v361 = vpack.c.b16 %v336, %v331
        %v362 = vpack.c.b16 %v342, %v337
        %v363 = vpack.c.b16 %v343, %v338
        %v364 = vpack.c.b16 %v344, %v339
        %v365 = vpack.c.b16 %v345, %v340
        %v366 = vpack.c.b16 %v346, %v341
        %v367 = vpack.c.b16 %v347, %v347
        %v368 = vpack.c.b16 %v348, %v348
        %v369 = vpack.c.b16 %v349, %v349
        %v370 = vpack.c.b16 %v350, %v350
        %v371 = vpack.c.b16 %v351, %v351
        %vm387 = vcmask 400384
        %v389 = vsel %vm387, %v292, 0
        %v392 = vsel %vm387, %v293, 0
        %v395 = vsel %vm387, %v294, 0
        %v398 = vsel %vm387, %v295, 0
        %vm400 = vcmask 1040384
        %v401 = vsel 0, 4294967295, 65535
        %v402 = vsel %vm400, %v401, 0
        %v404 = vand.u32 %v367, %v402
        %v407 = vand.u32 %v368, %v402
        %v410 = vand.u32 %v369, %v402
        %v413 = vand.u32 %v370, %v402
        %v416 = vand.u32 %v371, %v402
        %418 = vmatprep.subr.bf16.mxu0 %v353
        %419 = vmatpush1.bf16.msra.mxu0 %v352
        %420 = vmatprep.subr.bf16.mxu0 %v358
        %421 = vmatpush1.bf16.msra.mxu0 %v357
        %422 = vmatprep.subr.bf16.mxu0 %v363
        %423 = vmatpush1.bf16.msra.mxu0 %v362
        %424 = vmatprep.subr.bf16.mxu0 %v407
        %425 = vmatpush1.bf16.msra.mxu0 %v404
        %426 = vmatprep.subr.bf16.mxu0 0
        %427 = vmatpush1.bf16.msra.mxu0 0
        %428 = vmatprep.subr.bf16.mxu0 0
        %429 = vmatpush1.bf16.msra.mxu0 0
        %430 = vmatprep.subr.bf16.mxu0 0
        %431 = vmatpush1.bf16.msra.mxu0 0
        %432 = vmatprep.subr.bf16.mxu0 0
        %433 = vmatpush1.bf16.msra.mxu0 0
        %434 = vmatprep.subr.bf16.mxu0 0
        %435 = vmatpush1.bf16.msra.mxu0 0
        %436 = vmatprep.subr.bf16.mxu0 0
        %437 = vmatpush1.bf16.msra.mxu0 0
        %438 = vmatprep.subr.bf16.mxu0 0
        %439 = vmatpush1.bf16.msra.mxu0 0
        %440 = vmatprep.subr.bf16.mxu0 0
        %441 = vmatpush1.bf16.msra.mxu0 0
        %442 = vmatprep.subr.bf16.mxu0 0
        %443 = vmatpush1.bf16.msra.mxu0 0
        %444 = vmatprep.subr.bf16.mxu0 0
        %445 = vmatpush1.bf16.msra.mxu0 0
        %446 = vmatprep.subr.bf16.mxu0 0
        %447 = vmatpush1.bf16.msra.mxu0 0
        %448 = vmatprep.subr.bf16.mxu0 0
        %449 = vmatpush1.bf16.msra.mxu0 0
        %450 = vmatprep.mubr.bf16.mxu0 0
        %451 = vmatmul.mubr.bf16.gmra.mrb[0].mxu0 %v389
        %v452 = vpop.f32.mrb[0].mxu0
        %v453 = vadd.f32 0.0, %v452
        %v454 = vpop.f32.mrb[0].mxu0
        %v455 = vadd.f32 0.0, %v454
        %v456 = vpop.f32.mrb[0].mxu0
        %v457 = vadd.f32 0.0, %v456
        %v458 = vpop.f32.mrb[0].mxu0
        %v459 = vadd.f32 0.0, %v458
        %460 = vmatprep.mubr.bf16.mxu0 0
        %461 = vmatmul.mubr.bf16.gmra.mrb[0].mxu0 %v392
        %v462 = vpop.f32.mrb[0].mxu0
        %v463 = vadd.f32 0.0, %v462
        %v464 = vpop.f32.mrb[0].mxu0
        %v465 = vadd.f32 0.0, %v464
        %v466 = vpop.f32.mrb[0].mxu0
        %v467 = vadd.f32 0.0, %v466
        %v468 = vpop.f32.mrb[0].mxu0
        %v469 = vadd.f32 0.0, %v468
        %470 = vmatprep.mubr.bf16.mxu0 0
        %471 = vmatmul.mubr.bf16.gmra.mrb[0].mxu0 %v395
        %v472 = vpop.f32.mrb[0].mxu0
        %v473 = vadd.f32 0.0, %v472
        %v474 = vpop.f32.mrb[0].mxu0
        %v475 = vadd.f32 0.0, %v474
        %v476 = vpop.f32.mrb[0].mxu0
        %v477 = vadd.f32 0.0, %v476
        %v478 = vpop.f32.mrb[0].mxu0
        %v479 = vadd.f32 0.0, %v478
        %480 = vmatprep.mubr.bf16.mxu0 0
        %481 = vmatmul.mubr.bf16.gmra.mrb[0].mxu0 %v398
        %v482 = vpop.f32.mrb[0].mxu0
        %v483 = vadd.f32 0.0, %v482
        %v484 = vpop.f32.mrb[0].mxu0
        %v485 = vadd.f32 0.0, %v484
        %v486 = vpop.f32.mrb[0].mxu0
        %v487 = vadd.f32 0.0, %v486
        %v488 = vpop.f32.mrb[0].mxu0
        %v489 = vadd.f32 0.0, %v488
        %490 = vdwg.mxu0
        %491 = vmatprep.subr.bf16.mxu0 %v355
        %492 = vmatpush1.bf16.msra.mxu0 %v354
        %493 = vmatprep.subr.bf16.mxu0 %v360
        %494 = vmatpush1.bf16.msra.mxu0 %v359
        %495 = vmatprep.subr.bf16.mxu0 %v365
        %496 = vmatpush1.bf16.msra.mxu0 %v364
        %497 = vmatprep.subr.bf16.mxu0 %v413
        %498 = vmatpush1.bf16.msra.mxu0 %v410
        %499 = vmatprep.subr.bf16.mxu0 0
        %500 = vmatpush1.bf16.msra.mxu0 0
        %501 = vmatprep.subr.bf16.mxu0 0
        %502 = vmatpush1.bf16.msra.mxu0 0
        %503 = vmatprep.subr.bf16.mxu0 0
        %504 = vmatpush1.bf16.msra.mxu0 0
        %505 = vmatprep.subr.bf16.mxu0 0
        %506 = vmatpush1.bf16.msra.mxu0 0
        %507 = vmatprep.subr.bf16.mxu0 0
        %508 = vmatpush1.bf16.msra.mxu0 0
        %509 = vmatprep.subr.bf16.mxu0 0
        %510 = vmatpush1.bf16.msra.mxu0 0
        %511 = vmatprep.subr.bf16.mxu0 0
        %512 = vmatpush1.bf16.msra.mxu0 0
        %513 = vmatprep.subr.bf16.mxu0 0
        %514 = vmatpush1.bf16.msra.mxu0 0
        %515 = vmatprep.subr.bf16.mxu0 0
        %516 = vmatpush1.bf16.msra.mxu0 0
        %517 = vmatprep.subr.bf16.mxu0 0
        %518 = vmatpush1.bf16.msra.mxu0 0
        %519 = vmatprep.subr.bf16.mxu0 0
        %520 = vmatpush1.bf16.msra.mxu0 0
        %521 = vmatprep.subr.bf16.mxu0 0
        %522 = vmatpush1.bf16.msra.mxu0 0
        %523 = vmatprep.mubr.bf16.mxu0 0
        %524 = vmatmul.mubr.bf16.gmra.mrb[0].mxu0 %v389
        %v525 = vpop.f32.mrb[0].mxu0
        %v526 = vadd.f32 0.0, %v525
        %v527 = vpop.f32.mrb[0].mxu0
        %v528 = vadd.f32 0.0, %v527
        %v529 = vpop.f32.mrb[0].mxu0
        %v530 = vadd.f32 0.0, %v529
        %v531 = vpop.f32.mrb[0].mxu0
        %v532 = vadd.f32 0.0, %v531
        %533 = vmatprep.mubr.bf16.mxu0 0
        %534 = vmatmul.mubr.bf16.gmra.mrb[0].mxu0 %v392
        %v535 = vpop.f32.mrb[0].mxu0
        %v536 = vadd.f32 0.0, %v535
        %v537 = vpop.f32.mrb[0].mxu0
        %v538 = vadd.f32 0.0, %v537
        %v539 = vpop.f32.mrb[0].mxu0
        %v540 = vadd.f32 0.0, %v539
        %v541 = vpop.f32.mrb[0].mxu0
        %v542 = vadd.f32 0.0, %v541
        %543 = vmatprep.mubr.bf16.mxu0 0
        %544 = vmatmul.mubr.bf16.gmra.mrb[0].mxu0 %v395
        %v545 = vpop.f32.mrb[0].mxu0
        %v546 = vadd.f32 0.0, %v545
        %v547 = vpop.f32.mrb[0].mxu0
        %v548 = vadd.f32 0.0, %v547
        %v549 = vpop.f32.mrb[0].mxu0
        %v550 = vadd.f32 0.0, %v549
        %v551 = vpop.f32.mrb[0].mxu0
        %v552 = vadd.f32 0.0, %v551
        %553 = vmatprep.mubr.bf16.mxu0 0
        %554 = vmatmul.mubr.bf16.gmra.mrb[0].mxu0 %v398
        %v555 = vpop.f32.mrb[0].mxu0
        %v556 = vadd.f32 0.0, %v555
        %v557 = vpop.f32.mrb[0].mxu0
        %v558 = vadd.f32 0.0, %v557
        %v559 = vpop.f32.mrb[0].mxu0
        %v560 = vadd.f32 0.0, %v559
        %v561 = vpop.f32.mrb[0].mxu0
        %v562 = vadd.f32 0.0, %v561
        %563 = vdwg.mxu0
        %564 = vmatprep.subr.bf16.mxu0 0
        %565 = vmatpush1.bf16.msra.mxu0 %v356
        %566 = vmatprep.subr.bf16.mxu0 0
        %567 = vmatpush1.bf16.msra.mxu0 %v361
        %568 = vmatprep.subr.bf16.mxu0 0
        %569 = vmatpush1.bf16.msra.mxu0 %v366
        %570 = vmatprep.subr.bf16.mxu0 0
        %571 = vmatpush1.bf16.msra.mxu0 %v416
        %572 = vmatprep.subr.bf16.mxu0 0
        %573 = vmatpush1.bf16.msra.mxu0 0
        %574 = vmatprep.subr.bf16.mxu0 0
        %575 = vmatpush1.bf16.msra.mxu0 0
        %576 = vmatprep.subr.bf16.mxu0 0
        %577 = vmatpush1.bf16.msra.mxu0 0
        %578 = vmatprep.subr.bf16.mxu0 0
        %579 = vmatpush1.bf16.msra.mxu0 0
        %580 = vmatprep.subr.bf16.mxu0 0
        %581 = vmatpush1.bf16.msra.mxu0 0
        %582 = vmatprep.subr.bf16.mxu0 0
        %583 = vmatpush1.bf16.msra.mxu0 0
        %584 = vmatprep.subr.bf16.mxu0 0
        %585 = vmatpush1.bf16.msra.mxu0 0
        %586 = vmatprep.subr.bf16.mxu0 0
        %587 = vmatpush1.bf16.msra.mxu0 0
        %588 = vmatprep.subr.bf16.mxu0 0
        %589 = vmatpush1.bf16.msra.mxu0 0
        %590 = vmatprep.subr.bf16.mxu0 0
        %591 = vmatpush1.bf16.msra.mxu0 0
        %592 = vmatprep.subr.bf16.mxu0 0
        %593 = vmatpush1.bf16.msra.mxu0 0
        %594 = vmatprep.subr.bf16.mxu0 0
        %595 = vmatpush1.bf16.msra.mxu0 0
        %596 = vmatprep.mubr.bf16.mxu0 0
        %597 = vmatmul.mubr.bf16.gmra.mrb[0].mxu0 %v389
        %v598 = vpop.f32.mrb[0].mxu0
        %v599 = vadd.f32 0.0, %v598
        %v600 = vpop.f32.mrb[0].mxu0
        %v601 = vpop.f32.mrb[0].mxu0
        %v602 = vadd.f32 0.0, %v601
        %v603 = vpop.f32.mrb[0].mxu0
        %604 = vmatprep.mubr.bf16.mxu0 0
        %605 = vmatmul.mubr.bf16.gmra.mrb[0].mxu0 %v392
        %v606 = vpop.f32.mrb[0].mxu0
        %v607 = vadd.f32 0.0, %v606
        %v608 = vpop.f32.mrb[0].mxu0
        %v609 = vpop.f32.mrb[0].mxu0
        %v610 = vadd.f32 0.0, %v609
        %v611 = vpop.f32.mrb[0].mxu0
        %612 = vmatprep.mubr.bf16.mxu0 0
        %613 = vmatmul.mubr.bf16.gmra.mrb[0].mxu0 %v395
        %v614 = vpop.f32.mrb[0].mxu0
        %v615 = vadd.f32 0.0, %v614
        %v616 = vpop.f32.mrb[0].mxu0
        %v617 = vpop.f32.mrb[0].mxu0
        %v618 = vadd.f32 0.0, %v617
        %v619 = vpop.f32.mrb[0].mxu0
        %620 = vmatprep.mubr.bf16.mxu0 0
        %621 = vmatmul.mubr.bf16.gmra.mrb[0].mxu0 %v398
        %v622 = vpop.f32.mrb[0].mxu0
        %v623 = vadd.f32 0.0, %v622
        %v624 = vpop.f32.mrb[0].mxu0
        %v625 = vpop.f32.mrb[0].mxu0
        %v626 = vadd.f32 0.0, %v625
        %v627 = vpop.f32.mrb[0].mxu0
        %628 = vdwg.mxu0
        %v629 = vrot.slane %v455, 1
        %v630 = vrot.slane %v459, 1
        %v631 = vrot.slane %v465, 1
        %v632 = vrot.slane %v469, 1
        %v633 = vrot.slane %v475, 1
        %v634 = vrot.slane %v479, 1
        %v635 = vrot.slane %v485, 1
        %v636 = vrot.slane %v489, 1
        %v637 = vlaneseq
        %v638 = vshrl.u32 %v637, 7
        %vm639 = vcmp.lt.s32.totalorder %v638, 7
        %v640 = vsel %vm639, %v635, %v636
        %v641 = vsel %vm639, %v634, %v635
        %v642 = vsel %vm639, %v633, %v634
        %v643 = vsel %vm639, %v632, %v633
        %v644 = vsel %vm639, %v631, %v632
        %v645 = vsel %vm639, %v630, %v631
        %v646 = vsel %vm639, %v629, %v630
        %v647 = vsel %vm639, %v636, %v629
        %v648 = vadd.f32 %v453, %v646
        %v649 = vadd.f32 %v457, %v645
        %v650 = vadd.f32 %v463, %v644
        %v651 = vadd.f32 %v467, %v643
        %v652 = vadd.f32 %v473, %v642
        %v653 = vadd.f32 %v477, %v641
        %v654 = vadd.f32 %v483, %v640
        %v655 = vadd.f32 %v487, %v647
        %v656 = vrot.slane %v526, 2
        %v657 = vrot.slane %v530, 2
        %v658 = vrot.slane %v536, 2
        %v659 = vrot.slane %v540, 2
        %v660 = vrot.slane %v546, 2
        %v661 = vrot.slane %v550, 2
        %v662 = vrot.slane %v556, 2
        %v663 = vrot.slane %v560, 2
        %vm664 = vcmp.lt.s32.totalorder %v638, 6
        %v665 = vsel %vm664, %v662, %v663
        %v666 = vsel %vm664, %v661, %v662
        %v667 = vsel %vm664, %v660, %v661
        %v668 = vsel %vm664, %v659, %v660
        %v669 = vsel %vm664, %v658, %v659
        %v670 = vsel %vm664, %v657, %v658
        %v671 = vsel %vm664, %v656, %v657
        %v672 = vsel %vm664, %v663, %v656
        %v673 = vadd.f32 %v648, %v671
        %v674 = vadd.f32 %v649, %v670
        %v675 = vadd.f32 %v650, %v669
        %v676 = vadd.f32 %v651, %v668
        %v677 = vadd.f32 %v652, %v667
        %v678 = vadd.f32 %v653, %v666
        %v679 = vadd.f32 %v654, %v665
        %v680 = vadd.f32 %v655, %v672
        %v681 = vrot.slane %v528, 3
        %v682 = vrot.slane %v532, 3
        %v683 = vrot.slane %v538, 3
        %v684 = vrot.slane %v542, 3
        %v685 = vrot.slane %v548, 3
        %v686 = vrot.slane %v552, 3
        %v687 = vrot.slane %v558, 3
        %v688 = vrot.slane %v562, 3
        %vm689 = vcmp.lt.s32.totalorder %v638, 5
        %v690 = vsel %vm689, %v687, %v688
        %v691 = vsel %vm689, %v686, %v687
        %v692 = vsel %vm689, %v685, %v686
        %v693 = vsel %vm689, %v684, %v685
        %v694 = vsel %vm689, %v683, %v684
        %v695 = vsel %vm689, %v682, %v683
        %v696 = vsel %vm689, %v681, %v682
        %v697 = vsel %vm689, %v688, %v681
        %v698 = vadd.f32 %v673, %v696
        %v699 = vadd.f32 %v674, %v695
        %v700 = vadd.f32 %v675, %v694
        %v701 = vadd.f32 %v676, %v693
        %v702 = vadd.f32 %v677, %v692
        %v703 = vadd.f32 %v678, %v691
        %v704 = vadd.f32 %v679, %v690
        %v705 = vadd.f32 %v680, %v697
        %v706 = vrot.slane %v599, 4
        %v707 = vrot.slane %v602, 4
        %v708 = vrot.slane %v607, 4
        %v709 = vrot.slane %v610, 4
        %v710 = vrot.slane %v615, 4
        %v711 = vrot.slane %v618, 4
        %v712 = vrot.slane %v623, 4
        %v713 = vrot.slane %v626, 4
        %vm714 = vcmp.lt.s32.totalorder %v638, 4
        %v715 = vsel %vm714, %v712, %v713
        %v716 = vsel %vm714, %v711, %v712
        %v717 = vsel %vm714, %v710, %v711
        %v718 = vsel %vm714, %v709, %v710
        %v719 = vsel %vm714, %v708, %v709
        %v720 = vsel %vm714, %v707, %v708
        %v721 = vsel %vm714, %v706, %v707
        %v722 = vsel %vm714, %v713, %v706
        %v723 = vadd.f32 %v698, %v721
        %v724 = vadd.f32 %v699, %v720
        %v725 = vadd.f32 %v700, %v719
        %v726 = vadd.f32 %v701, %v718
        %v727 = vadd.f32 %v702, %v717
        %v728 = vadd.f32 %v703, %v716
        %v729 = vadd.f32 %v704, %v715
        %v730 = vadd.f32 %v705, %v722
        %v731 = vtanh.pop %v723
        %v732 = vtanh.pop %v724
        %v733 = vtanh.pop %v725
        %v734 = vtanh.pop %v726
        %v735 = vtanh.pop %v727
        %v736 = vtanh.pop %v728
        %v737 = vtanh.pop %v729
        %v738 = vtanh.pop %v730
        %v739 = vadd.s32 %v638, 8
        %v740 = vadd.s32 %v638, 16
        %v741 = vadd.s32 %v638, 24
        %v742 = vadd.s32 %v638, 32
        %v743 = vadd.s32 %v638, 40
        %v744 = vadd.s32 %v638, 48
        %v745 = vadd.s32 %v638, 56
        %vm746 = vcmp.lt.s32.totalorder %v638, 0
        %v747 = vsub.s32 0, %v638
        %v748 = vsel %vm746, %v747, %v638
        %v749 = vshrl.u32 %v748, 3
        %v750 = vand.u32 %v748, 7
        %v751 = vsub.s32 0, %v750
        %v752 = vsel %vm746, %v751, %v750
        %vm753 = vcmp.lt.s32.totalorder %v739, 0
        %v754 = vsub.s32 0, %v739
        %v755 = vsel %vm753, %v754, %v739
        %v756 = vshrl.u32 %v755, 3
        %v757 = vand.u32 %v755, 7
        %v758 = vsub.s32 0, %v757
        %v759 = vsel %vm753, %v758, %v757
        %vm760 = vcmp.lt.s32.totalorder %v740, 0
        %v761 = vsub.s32 0, %v740
        %v762 = vsel %vm760, %v761, %v740
        %v763 = vshrl.u32 %v762, 3
        %v764 = vand.u32 %v762, 7
        %v765 = vsub.s32 0, %v764
        %v766 = vsel %vm760, %v765, %v764
        %vm767 = vcmp.lt.s32.totalorder %v741, 0
        %v768 = vsub.s32 0, %v741
        %v769 = vsel %vm767, %v768, %v741
        %v770 = vshrl.u32 %v769, 3
        %v771 = vand.u32 %v769, 7
        %v772 = vsub.s32 0, %v771
        %v773 = vsel %vm767, %v772, %v771
        %vm774 = vcmp.lt.s32.totalorder %v742, 0
        %v775 = vsub.s32 0, %v742
        %v776 = vsel %vm774, %v775, %v742
        %v777 = vshrl.u32 %v776, 3
        %v778 = vand.u32 %v776, 7
        %v779 = vsub.s32 0, %v778
        %v780 = vsel %vm774, %v779, %v778
        %vm781 = vcmp.lt.s32.totalorder %v743, 0
        %v782 = vsub.s32 0, %v743
        %v783 = vsel %vm781, %v782, %v743
        %v784 = vshrl.u32 %v783, 3
        %v785 = vand.u32 %v783, 7
        %v786 = vsub.s32 0, %v785
        %v787 = vsel %vm781, %v786, %v785
        %vm788 = vcmp.lt.s32.totalorder %v744, 0
        %v789 = vsub.s32 0, %v744
        %v790 = vsel %vm788, %v789, %v744
        %v791 = vshrl.u32 %v790, 3
        %v792 = vand.u32 %v790, 7
        %v793 = vsub.s32 0, %v792
        %v794 = vsel %vm788, %v793, %v792
        %vm795 = vcmp.lt.s32.totalorder %v745, 0
        %v796 = vsub.s32 0, %v745
        %v797 = vsel %vm795, %v796, %v745
        %v798 = vshrl.u32 %v797, 3
        %v799 = vand.u32 %v797, 7
        %v800 = vsub.s32 0, %v799
        %v801 = vsel %vm795, %v800, %v799
        %vm802 = vcmp.ne.s32.totalorder %v752, 0
        %vm803 = vcmp.ne.s32.totalorder %v759, 0
        %vm804 = vcmp.ne.s32.totalorder %v766, 0
        %vm805 = vcmp.ne.s32.totalorder %v773, 0
        %vm806 = vcmp.ne.s32.totalorder %v780, 0
        %vm807 = vcmp.ne.s32.totalorder %v787, 0
        %vm808 = vcmp.ne.s32.totalorder %v794, 0
        %vm809 = vcmp.ne.s32.totalorder %v801, 0
        %vm810 = vcmp.lt.s32.totalorder %v752, 0
        %vm811 = vcmp.lt.s32.totalorder %v759, 0
        %vm812 = vcmp.lt.s32.totalorder %v766, 0
        %vm813 = vcmp.lt.s32.totalorder %v773, 0
        %vm814 = vcmp.lt.s32.totalorder %v780, 0
        %vm815 = vcmp.lt.s32.totalorder %v787, 0
        %vm816 = vcmp.lt.s32.totalorder %v794, 0
        %vm817 = vcmp.lt.s32.totalorder %v801, 0
        %vm818 = vmand %vm810, %vm802
        %vm819 = vmand %vm811, %vm803
        %vm820 = vmand %vm812, %vm804
        %vm821 = vmand %vm813, %vm805
        %vm822 = vmand %vm814, %vm806
        %vm823 = vmand %vm815, %vm807
        %vm824 = vmand %vm816, %vm808
        %vm825 = vmand %vm817, %vm809
        %v826 = vadd.s32 %v752, 8
        %v827 = vadd.s32 %v759, 8
        %v828 = vadd.s32 %v766, 8
        %v829 = vadd.s32 %v773, 8
        %v830 = vadd.s32 %v780, 8
        %v831 = vadd.s32 %v787, 8
        %v832 = vadd.s32 %v794, 8
        %v833 = vadd.s32 %v801, 8
        %v834 = vsel %vm818, %v826, %v752
        %v835 = vsel %vm819, %v827, %v759
        %v836 = vsel %vm820, %v828, %v766
        %v837 = vsel %vm821, %v829, %v773
        %v838 = vsel %vm822, %v830, %v780
        %v839 = vsel %vm823, %v831, %v787
        %v840 = vsel %vm824, %v832, %v794
        %v841 = vsel %vm825, %v833, %v801
        %v842 = vlaneseq
        %v843 = vand.u32 %v842, 127
        %vm844 = vcmp.ge.s32.totalorder %v843, 0
        %vm845 = vcmp.lt.s32.totalorder %v843, 16
        %vm846 = vmand %vm844, %vm845
        %v847 = vsel %vm846, 6, 0
        %vm848 = vcmp.ge.s32.totalorder %v843, 16
        %vm849 = vcmp.lt.s32.totalorder %v843, 32
        %vm850 = vmand %vm848, %vm849
        %v851 = vsel %vm850, 5, %v847
        %vm852 = vcmp.ge.s32.totalorder %v843, 32
        %vm853 = vcmp.lt.s32.totalorder %v843, 48
        %vm854 = vmand %vm852, %vm853
        %v855 = vsel %vm854, 4, %v851
        %vm856 = vcmp.lt.s32.totalorder %v834, %v855
        %vm857 = vcmp.lt.s32.totalorder %v835, %v855
        %vm858 = vcmp.lt.s32.totalorder %v836, %v855
        %vm859 = vcmp.lt.s32.totalorder %v837, %v855
        %vm860 = vcmp.lt.s32.totalorder %v838, %v855
        %vm861 = vcmp.lt.s32.totalorder %v839, %v855
        %vm862 = vcmp.lt.s32.totalorder %v840, %v855
        %vm863 = vcmp.lt.s32.totalorder %v841, %v855
        %v864 = vsel %vm856, %v731, -2.0
        %v865 = vsel %vm857, %v732, -2.0
        %v866 = vsel %vm858, %v733, -2.0
        %v867 = vsel %vm859, %v734, -2.0
        %v868 = vsel %vm860, %v735, -2.0
        %v869 = vsel %vm861, %v736, -2.0
        %v870 = vsel %vm862, %v737, -2.0
        %v871 = vsel %vm863, %v738, -2.0
        %v872 = vrot.slane %v864, 4
        %v873 = vmax.f32 %v864, %v872
        %v874 = vrot.slane %v873, 2
        %v875 = vmax.f32 %v873, %v874
        %v876 = vrot.slane %v875, 1
        %v877 = vmax.f32 %v875, %v876
        %v878 = vrot.slane %v865, 4
        %v879 = vmax.f32 %v865, %v878
        %v880 = vrot.slane %v879, 2
        %v881 = vmax.f32 %v879, %v880
        %v882 = vrot.slane %v881, 1
        %v883 = vmax.f32 %v881, %v882
        %v884 = vrot.slane %v866, 4
        %v885 = vmax.f32 %v866, %v884
        %v886 = vrot.slane %v885, 2
        %v887 = vmax.f32 %v885, %v886
        %v888 = vrot.slane %v887, 1
        %v889 = vmax.f32 %v887, %v888
        %v890 = vrot.slane %v867, 4
        %v891 = vmax.f32 %v867, %v890
        %v892 = vrot.slane %v891, 2
        %v893 = vmax.f32 %v891, %v892
        %v894 = vrot.slane %v893, 1
        %v895 = vmax.f32 %v893, %v894
        %v896 = vrot.slane %v868, 4
        %v897 = vmax.f32 %v868, %v896
        %v898 = vrot.slane %v897, 2
        %v899 = vmax.f32 %v897, %v898
        %v900 = vrot.slane %v899, 1
        %v901 = vmax.f32 %v899, %v900
        %v902 = vrot.slane %v869, 4
        %v903 = vmax.f32 %v869, %v902
        %v904 = vrot.slane %v903, 2
        %v905 = vmax.f32 %v903, %v904
        %v906 = vrot.slane %v905, 1
        %v907 = vmax.f32 %v905, %v906
        %v908 = vrot.slane %v870, 4
        %v909 = vmax.f32 %v870, %v908
        %v910 = vrot.slane %v909, 2
        %v911 = vmax.f32 %v909, %v910
        %v912 = vrot.slane %v911, 1
        %v913 = vmax.f32 %v911, %v912
        %v914 = vrot.slane %v871, 4
        %v915 = vmax.f32 %v871, %v914
        %v916 = vrot.slane %v915, 2
        %v917 = vmax.f32 %v915, %v916
        %v918 = vrot.slane %v917, 1
        %v919 = vmax.f32 %v917, %v918
        %v920 = vpack.c.bf16 %v877, %v877
        %v921 = vpack.c.bf16 %v883, %v883
        %v922 = vpack.c.bf16 %v889, %v889
        %v923 = vpack.c.bf16 %v895, %v895
        %v924 = vpack.c.bf16 %v901, %v901
        %v925 = vpack.c.bf16 %v907, %v907
        %v926 = vpack.c.bf16 %v913, %v913
        %v927 = vpack.c.bf16 %v919, %v919
        %v928 = vld [vmem:[#allocation7] sm:$0xf]
        %v929 = vld [vmem:[#allocation7 + $0x4] sm:$0xf]
        %v930 = vld [vmem:[#allocation7 + $0x8] sm:$0xf]
        %v931 = vld [vmem:[#allocation7 + $0xc] sm:$0xf]
        %v932 = vld [vmem:[#allocation7 + $0x10] sm:$0xf]
        %v933 = vld [vmem:[#allocation7 + $0x14] sm:$0xf]
        %v934 = vld [vmem:[#allocation7 + $0x18] sm:$0xf]
        %v935 = vld [vmem:[#allocation7 + $0x1c] sm:$0xf]
        %v936 = vld [vmem:[#allocation7 + $0x20] sm:$0xf]
        %v937 = vld [vmem:[#allocation7 + $0x24] sm:$0xf]
        %v938 = vld [vmem:[#allocation7 + $0x28] sm:$0xf]
        %v939 = vld [vmem:[#allocation7 + $0x2c] sm:$0xf]
        %v940 = vld [vmem:[#allocation7 + $0x30] sm:$0xf]
        %v941 = vld [vmem:[#allocation7 + $0x34] sm:$0xf]
        %v942 = vld [vmem:[#allocation7 + $0x38] sm:$0xf]
        %v943 = vld [vmem:[#allocation7 + $0x3c] sm:$0xf]
        %v944 = vld [vmem:[%s3] sm:$0x1]
        %v946 = vlaneseq
        %v947 = vshrl.u32 %v946, 7
        %v948 = vsub.s32 0, %v947
        %v949 = vrot.slane %v944, %v948
        %v959 = vunpack.c.l.b16 %v920
        %v960 = vunpack.c.l.b16 %v921
        %v961 = vunpack.c.l.b16 %v922
        %v962 = vunpack.c.l.b16 %v923
        %v963 = vunpack.c.l.b16 %v924
        %v964 = vunpack.c.l.b16 %v925
        %v965 = vunpack.c.l.b16 %v926
        %v966 = vunpack.c.l.b16 %v927
        %vm967 = vcmask 1041409
        %v968 = vsel %vm967, %v960, %v959
        %vm969 = vcmask 1042434
        %v970 = vsel %vm969, %v961, %v968
        %vm971 = vcmask 1043459
        %v972 = vsel %vm971, %v962, %v970
        %vm973 = vcmask 1044484
        %v974 = vsel %vm973, %v963, %v972
        %vm975 = vcmask 1045509
        %v976 = vsel %vm975, %v964, %v974
        %vm977 = vcmask 1046534
        %v978 = vsel %vm977, %v965, %v976
        %vm979 = vcmask 1047559
        %v980 = vsel %vm979, %v966, %v978
        %v981 = vpack.c.b16 %v980, %v980
        %v999 = vunpack.c.l.b16 %v928
        %v1000 = vunpack.c.l.b16 %v929
        %v1001 = vunpack.c.l.b16 %v930
        %v1002 = vunpack.c.l.b16 %v931
        %v1003 = vunpack.c.l.b16 %v932
        %v1004 = vunpack.c.l.b16 %v933
        %v1005 = vunpack.c.l.b16 %v934
        %v1006 = vunpack.c.l.b16 %v935
        %v1007 = vunpack.c.l.b16 %v936
        %v1008 = vunpack.c.l.b16 %v937
        %v1009 = vunpack.c.l.b16 %v938
        %v1010 = vunpack.c.l.b16 %v939
        %v1011 = vunpack.c.l.b16 %v940
        %v1012 = vunpack.c.l.b16 %v941
        %v1013 = vunpack.c.l.b16 %v942
        %v1014 = vunpack.c.l.b16 %v943
        %v1015 = vpack.c.b16 %v1000, %v999
        %v1016 = vpack.c.b16 %v1002, %v1001
        %v1017 = vpack.c.b16 %v1004, %v1003
        %v1018 = vpack.c.b16 %v1006, %v1005
        %v1019 = vpack.c.b16 %v1008, %v1007
        %v1020 = vpack.c.b16 %v1010, %v1009
        %v1021 = vpack.c.b16 %v1012, %v1011
        %v1022 = vpack.c.b16 %v1014, %v1013
        %1031 = vmatprep.subr.bf16.mxu0 0
        %1032 = vmatpush1.bf16.msra.mxu0 %v1015
        %1033 = vmatprep.subr.bf16.mxu0 0
        %1034 = vmatpush1.bf16.msra.mxu0 %v1016
        %1035 = vmatprep.subr.bf16.mxu0 0
        %1036 = vmatpush1.bf16.msra.mxu0 %v1017
        %1037 = vmatprep.subr.bf16.mxu0 0
        %1038 = vmatpush1.bf16.msra.mxu0 %v1018
        %1039 = vmatprep.subr.bf16.mxu0 0
        %1040 = vmatpush1.bf16.msra.mxu0 %v1019
        %1041 = vmatprep.subr.bf16.mxu0 0
        %1042 = vmatpush1.bf16.msra.mxu0 %v1020
        %1043 = vmatprep.subr.bf16.mxu0 0
        %1044 = vmatpush1.bf16.msra.mxu0 %v1021
        %1045 = vmatprep.subr.bf16.mxu0 0
        %1046 = vmatpush1.bf16.msra.mxu0 %v1022
        %1047 = vmatprep.subr.bf16.mxu0 0
        %1048 = vmatpush1.bf16.msra.mxu0 0
        %1049 = vmatprep.subr.bf16.mxu0 0
        %1050 = vmatpush1.bf16.msra.mxu0 0
        %1051 = vmatprep.subr.bf16.mxu0 0
        %1052 = vmatpush1.bf16.msra.mxu0 0
        %1053 = vmatprep.subr.bf16.mxu0 0
        %1054 = vmatpush1.bf16.msra.mxu0 0
        %1055 = vmatprep.subr.bf16.mxu0 0
        %1056 = vmatpush1.bf16.msra.mxu0 0
        %1057 = vmatprep.subr.bf16.mxu0 0
        %1058 = vmatpush1.bf16.msra.mxu0 0
        %1059 = vmatprep.subr.bf16.mxu0 0
        %1060 = vmatpush1.bf16.msra.mxu0 0
        %1061 = vmatprep.subr.bf16.mxu0 0
        %1062 = vmatpush1.bf16.msra.mxu0 0
        %1063 = vmatprep.mubr.bf16.mxu0 0
        %1064 = vmatmul.mubr.bf16.gmra.mrb[0].mxu0 %v981
        %v1065 = vpop.f32.mrb[0].mxu0
        %v1066 = vadd.f32 %v949, %v1065
        %v1067 = vpop.f32.mrb[0].mxu0
        %v1068 = vpop.f32.mrb[0].mxu0
        %v1069 = vpop.f32.mrb[0].mxu0
        %1070 = vdwg.mxu0
        %1071 = vst [vmem:[%s244] sm:$0xff] %v1066
        %s1072 = sand.u32 %s119, 1
        %s1073 = scalar_lea.sflag [#allocation4], %s1072
        %s1074 = sand.u32 %s119, 1
        %s1075 = smul.addr %s1074, 8
        %s1076 = scalar_lea.vmem [#allocation8], %s1075
        // Predicated region
        $region49: #{tpu_custom_call.1} parent=35 // pred_check
          %p1077 = pneg %p129
        $region50: #{tpu_custom_call.1} parent=35 // pred_check_branch
          %1079 = sbr.rel (%p1077) target = $region52
        $region51: #{tpu_custom_call.1} parent=35 // pred_region
          %s1081 = ssub.s32 128, 128
          %1082 = vsyncadd %s1073, %s1081
          %s1083 = smul.addr %s22, 128
          %s1084 = scalar_lea.hbm %s4, %s1083
          %s1086 = sshll.u32 %s1076, 4
          %s1087 = int_to_ptr.vmem [resolvable:$true] %s1086
          %1089 = dma.vmem_to_hbm [thread:$0]  %s1087, 128, %s1084, %s1073
        $region52: #{tpu_custom_call.1} parent=35 // pred_fallthru
          _
      $region36: #{tpu_custom_call.1} parent=5 // pred_fallthru
        _
      %p1090 = scmp.le.s32.totalorder 2, %s17
      // Predicated region
      $region53: #{tpu_custom_call.1} parent=5 // pred_check
        %p1091 = pneg %p1090
      $region54: #{tpu_custom_call.1} parent=5 // pred_check_branch
        %1093 = sbr.rel (%p1091) target = $region56
      $region55: #{tpu_custom_call.1} parent=5 // pred_region
        %s1094 = ssub.s32 %s17, 2
        // Predicated region
        $region57: #{tpu_custom_call.1} parent=55 // pred_check
          %p1095 = pneg %p135
        $region58: #{tpu_custom_call.1} parent=55 // pred_check_branch
          %1097 = sbr.rel (%p1095) target = $region60
        $region59: #{tpu_custom_call.1} parent=55 // pred_region
          %s1098 = sand.u32 %s120, 1
          %s1099 = scalar_lea.sflag [#allocation4], %s1098
          %s1100 = sand.u32 %s120, 1
          %s1101 = smul.addr %s1100, 8
          %s1102 = scalar_lea.vmem [#allocation8], %s1101
          %1103 = dma.done %s1099, 128
        $region60: #{tpu_custom_call.1} parent=55 // pred_fallthru
          _
      $region56: #{tpu_custom_call.1} parent=5 // pred_fallthru
        _
    $region6: #{tpu_custom_call.1} parent=1 // loop_footer
      %s21 = sadd.s32 1, %s17
    $region7: #{tpu_custom_call.1} parent=1 // loop_footer_branch
      %16 = sbr.rel target = $region3
    $region8: #{tpu_custom_call.1} parent=1 // loop_exit
      _
    %1104 = vsyncpa [#allocation3], 1
    %s1105 = scalar_lea.sflag [#allocation3], 1
    %1106 = vsyncpa %s1105, 1
    %1107 = vsyncpa [#allocation6], 1
    %1108 = vsyncpa [#allocation4], 1
    %s1109 = scalar_lea.sflag [#allocation4], 1
    %1110 = vsyncpa %s1109, 1

</llo_original>
